<compile_context>
chip_gen: v7x
topology: tpu7x:2x2x1
jax: 0.10.0
libtpu: 0.0.40
codegen_flags: <defaults>
</compile_context>

<pallas_src>
import functools

import jax
import jax.numpy as jnp
from jax.experimental import pallas as pl
from jax.experimental.pallas import tpu as pltpu


# ---------------------------------------------------------------------------
# Pass 1: streaming reductions (L1 sum + global min/max of x and inputs).
# ---------------------------------------------------------------------------
def _reduce_kernel(xf_ref, inp_ref, x_ref, stats_ref):
    step = pl.program_id(0)

    xf = xf_ref[...].astype(jnp.float32)
    inp = inp_ref[...].astype(jnp.float32)
    x = x_ref[...].astype(jnp.float32)

    l1 = jnp.sum(jnp.abs(xf - inp))
    x_min = jnp.min(x)
    x_max = jnp.max(x)
    i_min = jnp.min(inp)
    i_max = jnp.max(inp)

    @pl.when(step == 0)
    def _():
        stats_ref[0] = l1
        stats_ref[1] = x_min
        stats_ref[2] = x_max
        stats_ref[3] = i_min
        stats_ref[4] = i_max

    @pl.when(step != 0)
    def _():
        stats_ref[0] = stats_ref[0] + l1
        stats_ref[1] = jnp.minimum(stats_ref[1], x_min)
        stats_ref[2] = jnp.maximum(stats_ref[2], x_max)
        stats_ref[3] = jnp.minimum(stats_ref[3], i_min)
        stats_ref[4] = jnp.maximum(stats_ref[4], i_max)


# ---------------------------------------------------------------------------
# Pass 2: elementwise normalize with hoisted scale/offset (no per-elem divide).
# ---------------------------------------------------------------------------
def _normalize_kernel(scal_ref, x_ref, inp_ref, xnorm_ref, inorm_ref):
    x_scale = scal_ref[0]
    x_off = scal_ref[1]
    i_scale = scal_ref[2]
    i_off = scal_ref[3]
    xnorm_ref[...] = (
        x_ref[...].astype(jnp.float32) * x_scale + x_off).astype(xnorm_ref.dtype)
    inorm_ref[...] = (
        inp_ref[...].astype(jnp.float32) * i_scale + i_off).astype(inorm_ref.dtype)


# ---------------------------------------------------------------------------
# Layout helpers.
# ---------------------------------------------------------------------------
def _pick_lanes(n_elem, max_lane):
    assert n_elem % 128 == 0, (
        "B*C*H*W must be a multiple of 128 "
        "(TODO(synk): masked-padding path for ragged element counts)")
    candidates = (4096, 2048, 1024, 512, 256, 128)
    for cand in candidates:  # prefer lane widths whose row count is 8-aligned
        if cand <= max_lane and n_elem % cand == 0 and (n_elem // cand) % 8 == 0:
            return cand
    for cand in candidates:
        if cand <= max_lane and n_elem % cand == 0:
            return cand
    raise ValueError("no valid lane width")


def _pick_tile_rows(rows, lanes, bytes_per_elem, align, target_tile_bytes):
    max_tile_rows = max(align, target_tile_bytes // (lanes * bytes_per_elem))
    tile_rows = rows
    for d in range(min(rows, max_tile_rows), 0, -1):
        if rows % d == 0 and (d % align == 0 or d == rows):
            tile_rows = d
            break
    # TODO(synk): if `rows` has no suitable divisor within budget this falls
    # back to a full-height block (may exceed the VMEM budget for huge inputs).
    return tile_rows


def _channel_repeat3(t):
    """torch .repeat(1, 3, 1, 1) as a fusible broadcast (no materialized tile)."""
    b, c, h, w = t.shape
    return jnp.broadcast_to(t[:, None], (b, 3, c, h, w)).reshape(b, 3 * c, h, w)


# ---------------------------------------------------------------------------
# Pallas-call wrappers.
# ---------------------------------------------------------------------------
def _run_stats(xf2, inp2, x2, tile_rows, n_elem):
    rows, lanes = xf2.shape
    grid = (rows // tile_rows,)
    tile_spec = pl.BlockSpec((tile_rows, lanes), lambda i: (i, 0))
    return pl.pallas_call(
        _reduce_kernel,
        grid=grid,
        in_specs=[tile_spec, tile_spec, tile_spec],
        out_specs=pl.BlockSpec(memory_space=pltpu.SMEM),
        out_shape=jax.ShapeDtypeStruct((5,), jnp.float32),
        compiler_params=pltpu.CompilerParams(
            dimension_semantics=("arbitrary",),
            vmem_limit_bytes=32 << 20),
        cost_estimate=pl.CostEstimate(
            flops=6 * n_elem, transcendentals=0,
            bytes_accessed=3 * n_elem * 4),
    )(xf2, inp2, x2)


def _run_normalize(scal, x2, inp2, tile_rows, n_elem, out_dtype):
    rows, lanes = x2.shape
    grid = (rows // tile_rows,)
    tile_spec = pl.BlockSpec((tile_rows, lanes), lambda i: (i, 0))
    out_bytes = jnp.dtype(out_dtype).itemsize
    return pl.pallas_call(
        _normalize_kernel,
        grid=grid,
        in_specs=[pl.BlockSpec(memory_space=pltpu.SMEM), tile_spec, tile_spec],
        out_specs=(tile_spec, tile_spec),
        out_shape=(jax.ShapeDtypeStruct((rows, lanes), out_dtype),
                   jax.ShapeDtypeStruct((rows, lanes), out_dtype)),
        compiler_params=pltpu.CompilerParams(
            dimension_semantics=("parallel",),   # megacore sharding on v7x
            vmem_limit_bytes=32 << 20),
        cost_estimate=pl.CostEstimate(
            flops=4 * n_elem, transcendentals=0,
            bytes_accessed=2 * n_elem * 4 + 2 * n_elem * out_bytes),
    )(scal, x2, inp2)


# ---------------------------------------------------------------------------
# Public forward.
# ---------------------------------------------------------------------------
def lst_vae_loss(x_final, x, inputs, mu, logvar, lpips_fn, *,
                 data_length, batch_size,
                 norm_dtype=jnp.bfloat16,
                 max_lane=4096, target_tile_bytes=2 << 20):
    """JAX/Pallas equivalent of LSTVAELoss.forward."""
    loss_weight = float(data_length) / float(batch_size)
    n_elem = x_final.size

    lanes = _pick_lanes(n_elem, max_lane)
    rows = n_elem // lanes
    # Pass 1 handles only f32 tiles -> 8-row alignment; pass 2 stores 16-bit
    # outputs -> 16-row alignment (or a full-height block).
    tile_rows_1 = _pick_tile_rows(rows, lanes, 4, 8, target_tile_bytes)
    out_align = 16 if jnp.dtype(norm_dtype).itemsize == 2 else 8
    tile_rows_2 = _pick_tile_rows(rows, lanes, 4, out_align, target_tile_bytes)

    xf2 = x_final.reshape(rows, lanes)
    inp2 = inputs.reshape(rows, lanes)
    x2 = x.reshape(rows, lanes)

    # ---- pass 1: reductions ----
    stats = _run_stats(xf2, inp2, x2, tile_rows_1, n_elem)
    l1_sum, x_min, x_max, i_min, i_max = (stats[0], stats[1], stats[2],
                                          stats[3], stats[4])
    l1_loss = l1_sum / n_elem  # L1Loss(reduction='mean')

    # Hoisted normalize scalars: t*scale + offset == 2*(t-min)/(max-min+1e-8) - 1
    x_scale = 2.0 / (x_max - x_min + 1e-8)
    x_off = -x_min * x_scale - 1.0
    i_scale = 2.0 / (i_max - i_min + 1e-8)
    i_off = -i_min * i_scale - 1.0
    scal = jnp.stack([x_scale, x_off, i_scale, i_off]).astype(jnp.float32)

    # ---- pass 2: elementwise normalize ----
    xnorm2, inorm2 = _run_normalize(scal, x2, inp2, tile_rows_2, n_elem,
                                    norm_dtype)
    x_norm = xnorm2.reshape(x.shape)
    inp_norm = inorm2.reshape(inputs.shape)

    # KL divergence on the tiny (B, Z) latents: plain JAX (cheaper than extra
    # kernel plumbing / DMAs).
    mu32 = mu.astype(jnp.float32)
    lv32 = logvar.astype(jnp.float32)
    kl_div = -0.5 * jnp.sum(1.0 + lv32 - mu32 * mu32 - jnp.exp(lv32))

    recon_repeated = _channel_repeat3(x_norm)   # .repeat(1, 3, 1, 1)
    x_repeated = _channel_repeat3(inp_norm)
    lpips_loss = lpips_fn(recon_repeated, x_repeated)

    return kl_div + (l1_loss + lpips_loss * 10.0) * loss_weight


if __name__ == "__main__":
    key = jax.random.PRNGKey(0)
    k1, k2, k3, k4, k5 = jax.random.split(key, 5)

    B, C, H, W = 2, 4, 16, 16
    Z = 32
    data_length, batch_size = 100, B

    x_final = jax.random.normal(k1, (B, C, H, W), dtype=jnp.float32)
    x = jax.random.normal(k2, (B, C, H, W), dtype=jnp.float32)
    inputs = jax.random.normal(k3, (B, C, H, W), dtype=jnp.float32)
    mu = jax.random.normal(k4, (B, Z), dtype=jnp.float32)
    logvar = 0.1 * jax.random.normal(k5, (B, Z), dtype=jnp.float32)

    # Deterministic stand-in for the externally supplied LPIPS module.
    def lpips_proxy(a, b):
        return jnp.mean((a.astype(jnp.float32) - b.astype(jnp.float32)) ** 2)

    loss_fn = functools.partial(
        lst_vae_loss, lpips_fn=lpips_proxy,
        data_length=data_length, batch_size=batch_size)

    # Default layout (single grid step at this toy size).
    loss = loss_fn(x_final, x, inputs, mu, logvar)
    # Forced tiny tiles -> multi-step grid, exercises the accumulation path.
    loss_tiled = loss_fn(x_final, x, inputs, mu, logvar,
                         max_lane=128, target_tile_bytes=8 * 128 * 4)
    jax.block_until_ready((loss, loss_tiled))

    # Reference in plain JAX (same math; normalized tensors cast to bf16 like
    # the kernel outputs before the LPIPS stand-in).
    def norm_ref(t):
        mx, mn = jnp.max(t), jnp.min(t)
        return 2 * (t - mn) / (mx - mn + 1e-8) - 1

    l1_ref = jnp.mean(jnp.abs(x_final - inputs))
    kl_ref = -0.5 * jnp.sum(1 + logvar - mu ** 2 - jnp.exp(logvar))
    xr = norm_ref(x).astype(jnp.bfloat16)
    ir = norm_ref(inputs).astype(jnp.bfloat16)
    lp_ref = lpips_proxy(jnp.tile(xr, (1, 3, 1, 1)),
                         jnp.tile(ir, (1, 3, 1, 1)))
    ref = kl_ref + (l1_ref + lp_ref * 10.0) * (data_length / batch_size)

    assert jnp.allclose(loss, ref, rtol=1e-3, atol=1e-2), (loss, ref)
    assert jnp.allclose(loss_tiled, ref, rtol=1e-3, atol=1e-2), (loss_tiled, ref)
    print("KERNEL_OK")
</pallas_src>

<mosaic_0001>
module attributes {stable_mosaic.version = 11 : i64} {
  func.func @_reduce_kernel(%arg0: i32, %arg1: memref<8x256xf32, #tpu.memory_space<vmem>>, %arg2: memref<8x256xf32, #tpu.memory_space<vmem>>, %arg3: memref<8x256xf32, #tpu.memory_space<vmem>>, %arg4: memref<5xf32, #tpu.memory_space<smem>>) attributes {dimension_semantics = [#tpu.dimension_semantics<arbitrary>], iteration_bounds = array<i64: 1>, scalar_prefetch = 0 : i64, scratch_operands = 0 : i64, tpu.core_type = #tpu.core_type<tc>, window_params = [{transform_indices = @transform_0, window_bounds = array<i64: 8, 256>}, {transform_indices = @transform_1, window_bounds = array<i64: 8, 256>}, {transform_indices = @transform_2, window_bounds = array<i64: 8, 256>}, {transform_indices = @transform_3, window_bounds = array<i64: 5>}]} {
    %c0 = arith.constant 0 : index
    %c0_0 = arith.constant 0 : index
    %0 = vector.load %arg1[%c0, %c0_0] : memref<8x256xf32, #tpu.memory_space<vmem>>, vector<8x256xf32>
    %c0_1 = arith.constant 0 : index
    %c0_2 = arith.constant 0 : index
    %1 = vector.load %arg2[%c0_1, %c0_2] : memref<8x256xf32, #tpu.memory_space<vmem>>, vector<8x256xf32>
    %c0_3 = arith.constant 0 : index
    %c0_4 = arith.constant 0 : index
    %2 = vector.load %arg3[%c0_3, %c0_4] : memref<8x256xf32, #tpu.memory_space<vmem>>, vector<8x256xf32>
    %3 = arith.subf %0, %1 : vector<8x256xf32>
    %4 = math.absf %3 : vector<8x256xf32>
    %5 = vector.shape_cast %4 : vector<8x256xf32> to vector<1x8x256xf32>
    %cst = arith.constant dense<0.000000e+00> : vector<1xf32>
    %6 = vector.multi_reduction <add>, %5, %cst [1, 2] : vector<1x8x256xf32> to vector<1xf32>
    %7 = vector.shape_cast %6 : vector<1xf32> to vector<1x1x1xf32>
    %8 = vector.extract %7[0, 0, 0] : f32 from vector<1x1x1xf32>
    %9 = vector.shape_cast %2 : vector<8x256xf32> to vector<1x8x256xf32>
    %cst_5 = arith.constant dense<0x7F800000> : vector<1xf32>
    %10 = vector.multi_reduction <minimumf>, %9, %cst_5 [1, 2] : vector<1x8x256xf32> to vector<1xf32>
    %11 = vector.shape_cast %10 : vector<1xf32> to vector<1x1x1xf32>
    %12 = vector.extract %11[0, 0, 0] : f32 from vector<1x1x1xf32>
    %13 = vector.shape_cast %2 : vector<8x256xf32> to vector<1x8x256xf32>
    %cst_6 = arith.constant dense<0xFF800000> : vector<1xf32>
    %14 = vector.multi_reduction <maximumf>, %13, %cst_6 [1, 2] : vector<1x8x256xf32> to vector<1xf32>
    %15 = vector.shape_cast %14 : vector<1xf32> to vector<1x1x1xf32>
    %16 = vector.extract %15[0, 0, 0] : f32 from vector<1x1x1xf32>
    %17 = vector.shape_cast %1 : vector<8x256xf32> to vector<1x8x256xf32>
    %cst_7 = arith.constant dense<0x7F800000> : vector<1xf32>
    %18 = vector.multi_reduction <minimumf>, %17, %cst_7 [1, 2] : vector<1x8x256xf32> to vector<1xf32>
    %19 = vector.shape_cast %18 : vector<1xf32> to vector<1x1x1xf32>
    %20 = vector.extract %19[0, 0, 0] : f32 from vector<1x1x1xf32>
    %21 = vector.shape_cast %1 : vector<8x256xf32> to vector<1x8x256xf32>
    %cst_8 = arith.constant dense<0xFF800000> : vector<1xf32>
    %22 = vector.multi_reduction <maximumf>, %21, %cst_8 [1, 2] : vector<1x8x256xf32> to vector<1xf32>
    %23 = vector.shape_cast %22 : vector<1xf32> to vector<1x1x1xf32>
    %24 = vector.extract %23[0, 0, 0] : f32 from vector<1x1x1xf32>
    %c0_i32 = arith.constant 0 : i32
    %25 = arith.cmpi eq, %arg0, %c0_i32 : i32
    %26 = arith.extui %25 : i1 to i32
    %c0_i32_9 = arith.constant 0 : i32
    %27 = arith.cmpi ne, %26, %c0_i32_9 : i32
    scf.if %27 {
      %c0_12 = arith.constant 0 : index
      %31 = memref.load %arg4[%c0_12] : memref<5xf32, #tpu.memory_space<smem>>
      memref.store %8, %arg4[%c0_12] : memref<5xf32, #tpu.memory_space<smem>>
      %c1 = arith.constant 1 : index
      %32 = memref.load %arg4[%c1] : memref<5xf32, #tpu.memory_space<smem>>
      memref.store %12, %arg4[%c1] : memref<5xf32, #tpu.memory_space<smem>>
      %c2 = arith.constant 2 : index
      %33 = memref.load %arg4[%c2] : memref<5xf32, #tpu.memory_space<smem>>
      memref.store %16, %arg4[%c2] : memref<5xf32, #tpu.memory_space<smem>>
      %c3 = arith.constant 3 : index
      %34 = memref.load %arg4[%c3] : memref<5xf32, #tpu.memory_space<smem>>
      memref.store %20, %arg4[%c3] : memref<5xf32, #tpu.memory_space<smem>>
      %c4 = arith.constant 4 : index
      %35 = memref.load %arg4[%c4] : memref<5xf32, #tpu.memory_space<smem>>
      memref.store %24, %arg4[%c4] : memref<5xf32, #tpu.memory_space<smem>>
    } else {
    }
    %c0_i32_10 = arith.constant 0 : i32
    %28 = arith.cmpi ne, %arg0, %c0_i32_10 : i32
    %29 = arith.extui %28 : i1 to i32
    %c0_i32_11 = arith.constant 0 : i32
    %30 = arith.cmpi ne, %29, %c0_i32_11 : i32
    scf.if %30 {
      %c0_12 = arith.constant 0 : index
      %31 = memref.load %arg4[%c0_12] : memref<5xf32, #tpu.memory_space<smem>>
      %32 = arith.addf %31, %8 : f32
      %c0_13 = arith.constant 0 : index
      %33 = memref.load %arg4[%c0_13] : memref<5xf32, #tpu.memory_space<smem>>
      memref.store %32, %arg4[%c0_13] : memref<5xf32, #tpu.memory_space<smem>>
      %c1 = arith.constant 1 : index
      %34 = memref.load %arg4[%c1] : memref<5xf32, #tpu.memory_space<smem>>
      %35 = arith.minimumf %34, %12 : f32
      %c1_14 = arith.constant 1 : index
      %36 = memref.load %arg4[%c1_14] : memref<5xf32, #tpu.memory_space<smem>>
      memref.store %35, %arg4[%c1_14] : memref<5xf32, #tpu.memory_space<smem>>
      %c2 = arith.constant 2 : index
      %37 = memref.load %arg4[%c2] : memref<5xf32, #tpu.memory_space<smem>>
      %38 = arith.maximumf %37, %16 : f32
      %c2_15 = arith.constant 2 : index
      %39 = memref.load %arg4[%c2_15] : memref<5xf32, #tpu.memory_space<smem>>
      memref.store %38, %arg4[%c2_15] : memref<5xf32, #tpu.memory_space<smem>>
      %c3 = arith.constant 3 : index
      %40 = memref.load %arg4[%c3] : memref<5xf32, #tpu.memory_space<smem>>
      %41 = arith.minimumf %40, %20 : f32
      %c3_16 = arith.constant 3 : index
      %42 = memref.load %arg4[%c3_16] : memref<5xf32, #tpu.memory_space<smem>>
      memref.store %41, %arg4[%c3_16] : memref<5xf32, #tpu.memory_space<smem>>
      %c4 = arith.constant 4 : index
      %43 = memref.load %arg4[%c4] : memref<5xf32, #tpu.memory_space<smem>>
      %44 = arith.maximumf %43, %24 : f32
      %c4_17 = arith.constant 4 : index
      %45 = memref.load %arg4[%c4_17] : memref<5xf32, #tpu.memory_space<smem>>
      memref.store %44, %arg4[%c4_17] : memref<5xf32, #tpu.memory_space<smem>>
    } else {
    }
    return
  }
  func.func @transform_0(%arg0: i32) -> (i32, i32) {
    %c0_i32 = arith.constant 0 : i32
    %c0_i32_0 = arith.constant 0 : i32
    return %arg0, %c0_i32 : i32, i32
  }
  func.func @transform_1(%arg0: i32) -> (i32, i32) {
    %c0_i32 = arith.constant 0 : i32
    %c0_i32_0 = arith.constant 0 : i32
    return %arg0, %c0_i32 : i32, i32
  }
  func.func @transform_2(%arg0: i32) -> (i32, i32) {
    %c0_i32 = arith.constant 0 : i32
    %c0_i32_0 = arith.constant 0 : i32
    return %arg0, %c0_i32 : i32, i32
  }
  func.func @transform_3(%arg0: i32) -> i32 {
    %c0_i32 = arith.constant 0 : i32
    %c0_i32_0 = arith.constant 0 : i32
    return %c0_i32 : i32
  }
}

</mosaic_0001>

<llo_original>
// kernel: tpu_custom_call.1
$region0: #{tpu_custom_call.1}
  #allocation0 [shape = 'u32[]', space=smem, size = 0x4, offset = 0x4, fixed_abs, tag = 'smem constant byte address 0x4 - core index']
  #allocation1 [shape = 'u32[144,128]{1,0:T(1,128)}', space=vmem, size = 0x12000, scoped, tag = 'internal scratch']
  %s0 = inlined_call_operand.hbm [shape: f32[8,256], index: 0, kind: input, shape index: {}]
  %s1 = inlined_call_operand.hbm [shape: f32[8,256], index: 1, kind: input, shape index: {}]
  %s2 = inlined_call_operand.hbm [shape: f32[8,256], index: 2, kind: input, shape index: {}]
  %s3 = inlined_call_operand.hbm [shape: f32[5], index: 3, kind: output, shape index: {}]
  %s4 = sld [smem:[#allocation0]]
  $region42: #{tpu_custom_call.1} parent=0
    _
  %s6 = ssub.s32 1, %s4
  %s7 = scalar_select 0, %s6, %s4
  $region1: #{tpu_custom_call.1} parent=0
    #allocation2 [shape = 'u8[8192]{0}', space=vmem, size = 0x2000, scoped, tag = 'input window, operand 0, single buffered']
    #allocation3 [shape = 's32[1]{0}', space=sflag, size = 0x4, scoped, tag = 'scoped memory for tpu_custom_call.1']
    #allocation4 [shape = 's32[1]{0}', space=sflag, size = 0x4, scoped, tag = 'scoped memory for tpu_custom_call.1']
    #allocation5 [shape = 'u8[8192]{0}', space=vmem, size = 0x2000, scoped, tag = 'input window, operand 1, single buffered']
    #allocation6 [shape = 's32[1]{0}', space=sflag, size = 0x4, scoped, tag = 'scoped memory for tpu_custom_call.1']
    #allocation7 [shape = 'u8[8192]{0}', space=vmem, size = 0x2000, scoped, tag = 'input window, operand 2, single buffered']
    #allocation8 [shape = 'u8[512]{0}', space=smem, size = 0x200, scoped, tag = 'output window, operand 0, single buffered']
    %8 = vsyncpa [#allocation3], 0
    %9 = vsyncpa [#allocation6], 0
    %10 = vsyncpa [#allocation4], 0
    // Predicated region
    $region2: #{tpu_custom_call.1} parent=1 // pred_check
      _
    $region3: #{tpu_custom_call.1} parent=1 // pred_check_branch
      %12 = sbr.rel (0) target = $region5
    $region4: #{tpu_custom_call.1} parent=1 // pred_region
      %s14 = ssub.s32 256, 256
      %15 = vsyncadd [#allocation3], %s14
      %s17 = sshll.u32 [#allocation2], 4
      %s18 = int_to_ptr.vmem [resolvable:$true] %s17
      %20 = dma.hbm_to_vmem [thread:$0]  %s0, 256, %s18, [#allocation3]
    $region5: #{tpu_custom_call.1} parent=1 // pred_fallthru
      _
    // Predicated region
    $region6: #{tpu_custom_call.1} parent=1 // pred_check
      _
    $region7: #{tpu_custom_call.1} parent=1 // pred_check_branch
      %22 = sbr.rel (0) target = $region9
    $region8: #{tpu_custom_call.1} parent=1 // pred_region
      %s24 = ssub.s32 256, 256
      %25 = vsyncadd [#allocation6], %s24
      %s27 = sshll.u32 [#allocation5], 4
      %s28 = int_to_ptr.vmem [resolvable:$true] %s27
      %30 = dma.hbm_to_vmem [thread:$0]  %s1, 256, %s28, [#allocation6]
    $region9: #{tpu_custom_call.1} parent=1 // pred_fallthru
      _
    // Predicated region
    $region10: #{tpu_custom_call.1} parent=1 // pred_check
      _
    $region11: #{tpu_custom_call.1} parent=1 // pred_check_branch
      %32 = sbr.rel (0) target = $region13
    $region12: #{tpu_custom_call.1} parent=1 // pred_region
      %s34 = ssub.s32 256, 256
      %35 = vsyncadd [#allocation6], %s34
      %s37 = sshll.u32 [#allocation7], 4
      %s38 = int_to_ptr.vmem [resolvable:$true] %s37
      %40 = dma.hbm_to_vmem [thread:$0]  %s2, 256, %s38, [#allocation6]
    $region13: #{tpu_custom_call.1} parent=1 // pred_fallthru
      _
    // Predicated region
    $region14: #{tpu_custom_call.1} parent=1 // pred_check
      _
    $region15: #{tpu_custom_call.1} parent=1 // pred_check_branch
      %42 = sbr.rel (0) target = $region17
    $region16: #{tpu_custom_call.1} parent=1 // pred_region
      %43 = dma.done [#allocation3], 256
    $region17: #{tpu_custom_call.1} parent=1 // pred_fallthru
      _
    // Predicated region
    $region18: #{tpu_custom_call.1} parent=1 // pred_check
      _
    $region19: #{tpu_custom_call.1} parent=1 // pred_check_branch
      %45 = sbr.rel (0) target = $region21
    $region20: #{tpu_custom_call.1} parent=1 // pred_region
      %46 = dma.done [#allocation6], 256
    $region21: #{tpu_custom_call.1} parent=1 // pred_fallthru
      _
    // Predicated region
    $region22: #{tpu_custom_call.1} parent=1 // pred_check
      _
    $region23: #{tpu_custom_call.1} parent=1 // pred_check_branch
      %48 = sbr.rel (0) target = $region25
    $region24: #{tpu_custom_call.1} parent=1 // pred_region
      %49 = dma.done [#allocation6], 256
    $region25: #{tpu_custom_call.1} parent=1 // pred_fallthru
      _
    %v50 = vld [vmem:[#allocation2] sm:$0xff]
    %v51 = vld [vmem:[#allocation2 + $0x8] sm:$0xff]
    %v52 = vld [vmem:[#allocation5] sm:$0xff]
    %v53 = vld [vmem:[#allocation5 + $0x8] sm:$0xff]
    %v54 = vld [vmem:[#allocation7] sm:$0xff]
    %v55 = vld [vmem:[#allocation7 + $0x8] sm:$0xff]
    %v56 = vsub.f32 %v50, %v52
    %v57 = vsub.f32 %v51, %v53
    %v58 = vand.u32 2147483647, %v56
    %v59 = vand.u32 2147483647, %v57
    %v60 = vadd.f32 %v58, %v59
    %61 = vadd.xlane.f32.xlu0 %v60
    %v62 = vpop.xlane.xlu0 %61
    %v63 = vrot.slane %v62, 4
    %v64 = vadd.f32 %v62, %v63
    %v65 = vrot.slane %v64, 2
    %v66 = vadd.f32 %v64, %v65
    %v67 = vrot.slane %v66, 1
    %v68 = vadd.f32 %v66, %v67
    %s69 = vtos %v68
    %v70 = vmin.f32 %v54, %v55
    %71 = vmin.xlane.f32.xlu0 %v70
    %v72 = vpop.xlane.xlu0 %71
    %v73 = vrot.slane %v72, 4
    %v74 = vmin.f32 %v72, %v73
    %v75 = vrot.slane %v74, 2
    %v76 = vmin.f32 %v74, %v75
    %v77 = vrot.slane %v76, 1
    %v78 = vmin.f32 %v76, %v77
    %s79 = vtos %v78
    %v80 = vmax.f32 %v54, %v55
    %81 = vmax.xlane.f32.xlu0 %v80
    %v82 = vpop.xlane.xlu0 %81
    %v83 = vrot.slane %v82, 4
    %v84 = vmax.f32 %v82, %v83
    %v85 = vrot.slane %v84, 2
    %v86 = vmax.f32 %v84, %v85
    %v87 = vrot.slane %v86, 1
    %v88 = vmax.f32 %v86, %v87
    %s89 = vtos %v88
    %v90 = vmin.f32 %v52, %v53
    %91 = vmin.xlane.f32.xlu0 %v90
    %v92 = vpop.xlane.xlu0 %91
    %v93 = vrot.slane %v92, 4
    %v94 = vmin.f32 %v92, %v93
    %v95 = vrot.slane %v94, 2
    %v96 = vmin.f32 %v94, %v95
    %v97 = vrot.slane %v96, 1
    %v98 = vmin.f32 %v96, %v97
    %s99 = vtos %v98
    %v100 = vmax.f32 %v52, %v53
    %101 = vmax.xlane.f32.xlu0 %v100
    %v102 = vpop.xlane.xlu0 %101
    %v103 = vrot.slane %v102, 4
    %v104 = vmax.f32 %v102, %v103
    %v105 = vrot.slane %v104, 2
    %v106 = vmax.f32 %v104, %v105
    %v107 = vrot.slane %v106, 1
    %v108 = vmax.f32 %v106, %v107
    %s109 = vtos %v108
    %p110 = scmp.eq.s32.totalorder 0, 0
    // Predicated region
    $region26: #{tpu_custom_call.1} parent=1 // pred_check
      %p111 = pneg %p110
    $region27: #{tpu_custom_call.1} parent=1 // pred_check_branch
      %113 = sbr.rel (%p111) target = $region29
    $region28: #{tpu_custom_call.1} parent=1 // pred_region
      %s114 = scalar_lea.smem [#allocation8], 0
      %115 = sst [smem:[%s114]] %s69
      %s116 = scalar_lea.smem [#allocation8], 1
      %117 = sst [smem:[%s116]] %s79
      %s118 = scalar_lea.smem [#allocation8], 2
      %119 = sst [smem:[%s118]] %s89
      %s120 = scalar_lea.smem [#allocation8], 3
      %121 = sst [smem:[%s120]] %s99
      %s122 = scalar_lea.smem [#allocation8], 4
      %123 = sst [smem:[%s122]] %s109
    $region29: #{tpu_custom_call.1} parent=1 // pred_fallthru
      _
    %p124 = scmp.ne.s32.totalorder 0, 0
    // Predicated region
    $region30: #{tpu_custom_call.1} parent=1 // pred_check
      %p125 = pneg %p124
    $region31: #{tpu_custom_call.1} parent=1 // pred_check_branch
      %127 = sbr.rel (%p125) target = $region33
    $region32: #{tpu_custom_call.1} parent=1 // pred_region
      %s128 = sld [smem:[#allocation8]]
      %s129 = sadd.f32 %s128, %s69
      %s130 = scalar_lea.smem [#allocation8], 0
      %131 = sst [smem:[%s130]] %s129
      %s132 = sld [smem:[#allocation8 + $0x1]]
      %s133 = smin.f32 %s132, %s79
      %s134 = scalar_lea.smem [#allocation8], 1
      %135 = sst [smem:[%s134]] %s133
      %s136 = sld [smem:[#allocation8 + $0x2]]
      %s137 = smax.f32 %s136, %s89
      %s138 = scalar_lea.smem [#allocation8], 2
      %139 = sst [smem:[%s138]] %s137
      %s140 = sld [smem:[#allocation8 + $0x3]]
      %s141 = smin.f32 %s140, %s99
      %s142 = scalar_lea.smem [#allocation8], 3
      %143 = sst [smem:[%s142]] %s141
      %s144 = sld [smem:[#allocation8 + $0x4]]
      %s145 = smax.f32 %s144, %s109
      %s146 = scalar_lea.smem [#allocation8], 4
      %147 = sst [smem:[%s146]] %s145
    $region33: #{tpu_custom_call.1} parent=1 // pred_fallthru
      _
    // Predicated region
    $region34: #{tpu_custom_call.1} parent=1 // pred_check
      _
    $region35: #{tpu_custom_call.1} parent=1 // pred_check_branch
      %149 = sbr.rel (0) target = $region37
    $region36: #{tpu_custom_call.1} parent=1 // pred_region
      %s151 = ssub.s32 16, 16
      %152 = vsyncadd [#allocation4], %s151
      %155 = dma.smem_to_hbm [#allocation8], 16, %s3, [#allocation4]
    $region37: #{tpu_custom_call.1} parent=1 // pred_fallthru
      _
    // Predicated region
    $region38: #{tpu_custom_call.1} parent=1 // pred_check
      _
    $region39: #{tpu_custom_call.1} parent=1 // pred_check_branch
      %157 = sbr.rel (0) target = $region41
    $region40: #{tpu_custom_call.1} parent=1 // pred_region
      %158 = dma.done [#allocation4], 16
    $region41: #{tpu_custom_call.1} parent=1 // pred_fallthru
      _
    %159 = sfence
    %160 = vsyncpa [#allocation3], 1
    %161 = vsyncpa [#allocation6], 1
    %162 = vsyncpa [#allocation4], 1

</llo_original>
